<compile_context>
chip_gen: v5e
topology: v5e:2x2
jax: 0.10.0
libtpu: 0.0.40
codegen_flags: <defaults>
</compile_context>

<pallas_src>
import functools

import jax
import jax.numpy as jnp
from jax import lax
from jax.experimental import pallas as pl
from jax.experimental.pallas import tpu as pltpu


def _mix32(x):
    """lowbias32 integer mixer — cheap, good avalanche, pure VPU ops."""
    x = x ^ (x >> 16)
    x = x * jnp.uint32(0x7FEB352D)
    x = x ^ (x >> 15)
    x = x * jnp.uint32(0x846CA68B)
    x = x ^ (x >> 16)
    return x


def _core_distmult_kernel(seed_ref, h_ref, r_ref, o_ref, *, p_drop, training):
    h = h_ref[...]
    r = r_ref[...]
    x = h * r                                   # compute in input dtype (bf16 ok on v6e/v7x)

    if training and p_drop > 0.0:
        shape = x.shape
        block_rows, n_cols = shape

        # Global element counter (stateless, order-independent randomness).
        row = lax.broadcasted_iota(jnp.int32, shape, 0) + pl.program_id(0) * block_rows
        col = lax.broadcasted_iota(jnp.int32, shape, 1)
        ctr = row.astype(jnp.uint32) * jnp.uint32(n_cols) + col.astype(jnp.uint32)

        # Two independent keyed streams (h-mask / r-mask) from one counter.
        seed = seed_ref[0].astype(jnp.uint32)
        key_h = _mix32(seed ^ jnp.uint32(0x9E3779B9))
        key_r = _mix32(seed ^ jnp.uint32(0x85EBCA6B))

        # Integer-threshold Bernoulli: keep with probability (1 - p).
        thr = jnp.uint32(min(int(round(p_drop * (2.0 ** 32))), 2 ** 32 - 1))
        keep = (_mix32(ctr ^ key_h) >= thr) & (_mix32(ctr ^ key_r) >= thr)

        # Fused dropout-on-both-operands: dropout(h)*dropout(r)
        #   = keep_h*keep_r * h*r / (1-p)^2
        scale2 = jnp.asarray(1.0 / ((1.0 - p_drop) ** 2), dtype=x.dtype)
        x = jnp.where(keep, x * scale2, jnp.zeros_like(x))

    o_ref[...] = jnp.maximum(x, jnp.zeros_like(x)).astype(o_ref.dtype)   # ReLU


def core_distmult(h, r, *, seed=0, p_drop=0.2, training=True, tile_bytes=2 << 20):
    """x = relu(dropout(h) * dropout(r)), matching toolbox/nn/DistMult.CoreDistMult."""
    assert h.shape == r.shape and h.ndim == 2
    M, N = h.shape
    itemsize = jnp.dtype(h.dtype).itemsize

    # Lane-dense last dim: pad dim up to a multiple of 128.
    n_pad = -(-N // 128) * 128

    # Rows per tile: target ~tile_bytes per input array, multiple of 8,
    # capped at the (8-rounded) batch size.  Ragged batch handled by padding.
    bytes_per_row = n_pad * itemsize
    rows_target = max(8, (tile_bytes // bytes_per_row) // 8 * 8)
    m_pad8 = -(-M // 8) * 8
    block_rows = min(rows_target, m_pad8)
    m_pad = -(-M // block_rows) * block_rows
    grid = (m_pad // block_rows,)

    if (m_pad, n_pad) != (M, N):
        pad = ((0, m_pad - M), (0, n_pad - N))
        h_p = jnp.pad(h, pad)
        r_p = jnp.pad(r, pad)
    else:
        h_p, r_p = h, r

    # VMEM budget: 3 arrays (h, r, out) x 2 pipeline buffers, +50% headroom.
    footprint = 3 * 2 * block_rows * n_pad * itemsize
    vmem_limit = int(min(max(footprint * 1.5, 16 << 20), 48 << 20))

    kernel = functools.partial(
        _core_distmult_kernel, p_drop=float(p_drop), training=bool(training)
    )
    seed_arr = jnp.asarray([seed], dtype=jnp.int32)

    grid_spec = pltpu.PrefetchScalarGridSpec(
        num_scalar_prefetch=1,                       # seed -> SMEM
        grid=grid,
        in_specs=[
            pl.BlockSpec((block_rows, n_pad), lambda i, seed: (i, 0)),
            pl.BlockSpec((block_rows, n_pad), lambda i, seed: (i, 0)),
        ],
        out_specs=pl.BlockSpec((block_rows, n_pad), lambda i, seed: (i, 0)),
    )

    out = pl.pallas_call(
        kernel,
        out_shape=jax.ShapeDtypeStruct((m_pad, n_pad), h.dtype),
        grid_spec=grid_spec,
        compiler_params=pltpu.CompilerParams(
            # Randomness is counter-based (order-independent), so the batch
            # axis is safely parallel -> v7x can split it across both TCs.
            dimension_semantics=("parallel",),
            vmem_limit_bytes=vmem_limit,
        ),
    )(seed_arr, h_p, r_p)

    if (m_pad, n_pad) != (M, N):
        out = out[:M, :N]
    return out


if __name__ == "__main__":
    key = jax.random.PRNGKey(0)
    kh, kr = jax.random.split(key)

    # Deliberately not (8, 128)-aligned to exercise the padding path.
    batch, dim = 12, 200
    h = jax.random.normal(kh, (batch, dim), dtype=jnp.float32)
    r = jax.random.normal(kr, (batch, dim), dtype=jnp.float32)

    # Eval path (dropout = identity) — check against pure-JAX reference.
    out_eval = jax.block_until_ready(core_distmult(h, r, p_drop=0.2, training=False))
    ref_eval = jnp.maximum(h * r, 0.0)
    assert out_eval.shape == (batch, dim)
    assert jnp.allclose(out_eval, ref_eval, atol=1e-6), "eval path mismatch"

    # Training path (with dropout, deterministic seed).
    out_train = jax.block_until_ready(
        core_distmult(h, r, seed=0, p_drop=0.2, training=True)
    )
    assert out_train.shape == (batch, dim)
    assert bool(jnp.all(out_train >= 0.0))
    # Dropout must zero out at least some activations that are nonzero in eval.
    assert int(jnp.sum((out_train == 0.0) & (ref_eval > 0.0))) > 0

    print("KERNEL_OK")
</pallas_src>

<mosaic_0001>
module attributes {stable_mosaic.version = 11 : i64} {
  func.func @_core_distmult_kernel(%arg0: i32, %arg1: memref<1xi32, #tpu.memory_space<smem>>, %arg2: memref<16x256xf32, #tpu.memory_space<vmem>>, %arg3: memref<16x256xf32, #tpu.memory_space<vmem>>, %arg4: memref<16x256xf32, #tpu.memory_space<vmem>>) attributes {dimension_semantics = [#tpu.dimension_semantics<parallel>], iteration_bounds = array<i64: 1>, scalar_prefetch = 1 : i64, scratch_operands = 0 : i64, tpu.core_type = #tpu.core_type<tc>, window_params = [{transform_indices = @transform_0, window_bounds = array<i64: 16, 256>}, {transform_indices = @transform_1, window_bounds = array<i64: 16, 256>}, {transform_indices = @transform_2, window_bounds = array<i64: 16, 256>}]} {
    %c0 = arith.constant 0 : index
    %c0_0 = arith.constant 0 : index
    %0 = vector.load %arg2[%c0, %c0_0] : memref<16x256xf32, #tpu.memory_space<vmem>>, vector<16x256xf32>
    %c0_1 = arith.constant 0 : index
    %c0_2 = arith.constant 0 : index
    %1 = vector.load %arg3[%c0_1, %c0_2] : memref<16x256xf32, #tpu.memory_space<vmem>>, vector<16x256xf32>
    %2 = arith.mulf %0, %1 : vector<16x256xf32>
    %cst = arith.constant 0.000000e+00 : f32
    %3 = vector.broadcast %cst : f32 to vector<16x256xf32>
    %4 = arith.maximumf %2, %3 : vector<16x256xf32>
    %c0_3 = arith.constant 0 : index
    %c0_4 = arith.constant 0 : index
    %5 = vector.load %arg4[%c0_3, %c0_4] : memref<16x256xf32, #tpu.memory_space<vmem>>, vector<16x256xf32>
    tpu.vector_store %arg4[%c0_3, %c0_4], %4 {strides = array<i32>} : memref<16x256xf32, #tpu.memory_space<vmem>>, vector<16x256xf32>,
    return
  }
  func.func @transform_0(%arg0: i32, %arg1: memref<1xi32, #tpu.memory_space<smem>>) -> (i32, i32) {
    %c0_i32 = arith.constant 0 : i32
    %c0_i32_0 = arith.constant 0 : i32
    return %arg0, %c0_i32 : i32, i32
  }
  func.func @transform_1(%arg0: i32, %arg1: memref<1xi32, #tpu.memory_space<smem>>) -> (i32, i32) {
    %c0_i32 = arith.constant 0 : i32
    %c0_i32_0 = arith.constant 0 : i32
    return %arg0, %c0_i32 : i32, i32
  }
  func.func @transform_2(%arg0: i32, %arg1: memref<1xi32, #tpu.memory_space<smem>>) -> (i32, i32) {
    %c0_i32 = arith.constant 0 : i32
    %c0_i32_0 = arith.constant 0 : i32
    return %arg0, %c0_i32 : i32, i32
  }
}

</mosaic_0001>

<llo_original>
// kernel: tpu_custom_call.1
$region0: #{tpu_custom_call.1}
  #allocation0 [shape = 'u32[]', space=smem, size = 0x4, offset = 0x4, fixed_abs, tag = 'smem constant byte address 0x4 - core index']
  #allocation1 [shape = 'u32[72,128]{1,0:T(1,128)}', space=vmem, size = 0x9000, scoped, tag = 'internal scratch']
  #allocation2 [shape = 's32[1]{0}', space=sflag, size = 0x4, scoped, tag = 'scoped memory for tpu_custom_call.1']
  #allocation3 [shape = 's32[1]{0:T(128)S(6)}', space=smem, size = 0x200, scoped, tag = 'prefetched SMEM operand 0']
  %s0 = inlined_call_operand.<no memory space> [shape: s32[1], index: 0, kind: input, shape index: {}]
  %s1 = inlined_call_operand.hbm [shape: f32[16,256], index: 1, kind: input, shape index: {}]
  %s2 = inlined_call_operand.hbm [shape: f32[16,256], index: 2, kind: input, shape index: {}]
  %s3 = inlined_call_operand.hbm [shape: f32[16,256], index: 3, kind: output, shape index: {}]
  %s4 = sld [smem:[#allocation0]]
  $region26: #{tpu_custom_call.1} parent=0
    _
  %s6 = ssub.s32 1, %s4
  %s7 = scalar_select 0, %s6, %s4
  %8 = sst [smem:[#allocation3]] %s0
  $region1: #{tpu_custom_call.1} parent=0
    #allocation4 [shape = 'u8[16384]{0}', space=vmem, size = 0x4000, scoped, tag = 'input window, operand 1, single buffered']
    #allocation5 [shape = 's32[1]{0}', space=sflag, size = 0x4, scoped, tag = 'scoped memory for tpu_custom_call.1']
    #allocation6 [shape = 's32[1]{0}', space=sflag, size = 0x4, scoped, tag = 'scoped memory for tpu_custom_call.1']
    #allocation7 [shape = 'u8[16384]{0}', space=vmem, size = 0x4000, scoped, tag = 'input window, operand 2, single buffered']
    #allocation8 [shape = 's32[1]{0}', space=sflag, size = 0x4, scoped, tag = 'scoped memory for tpu_custom_call.1']
    #allocation9 [shape = 'u8[16384]{0}', space=vmem, size = 0x4000, scoped, tag = 'output window, operand 0, single buffered']
    %9 = vsyncpa [#allocation5], 0
    %10 = vsyncpa [#allocation8], 0
    %11 = vsyncpa [#allocation6], 0
    // Predicated region
    $region2: #{tpu_custom_call.1} parent=1 // pred_check
      _
    $region3: #{tpu_custom_call.1} parent=1 // pred_check_branch
      %13 = sbr.rel (0) target = $region5
    $region4: #{tpu_custom_call.1} parent=1 // pred_region
      %15 = vsyncadd [#allocation5], 0
      %s16 = sshll.u32 %s1, 4
      %s17 = int_to_ptr.hbm [resolvable:$true] %s16
      %s18 = sshll.u32 [#allocation4], 4
      %s19 = int_to_ptr.vmem [resolvable:$true] %s18
      %24 = dma.hbm_to_vmem [thread:$0]  %s17, 512, %s19, [#allocation5], 256, 256, 16
    $region5: #{tpu_custom_call.1} parent=1 // pred_fallthru
      _
    // Predicated region
    $region6: #{tpu_custom_call.1} parent=1 // pred_check
      _
    $region7: #{tpu_custom_call.1} parent=1 // pred_check_branch
      %26 = sbr.rel (0) target = $region9
    $region8: #{tpu_custom_call.1} parent=1 // pred_region
      %28 = vsyncadd [#allocation8], 0
      %s29 = sshll.u32 %s2, 4
      %s30 = int_to_ptr.hbm [resolvable:$true] %s29
      %s31 = sshll.u32 [#allocation7], 4
      %s32 = int_to_ptr.vmem [resolvable:$true] %s31
      %37 = dma.hbm_to_vmem [thread:$0]  %s30, 512, %s32, [#allocation8], 256, 256, 16
    $region9: #{tpu_custom_call.1} parent=1 // pred_fallthru
      _
    // Predicated region
    $region10: #{tpu_custom_call.1} parent=1 // pred_check
      _
    $region11: #{tpu_custom_call.1} parent=1 // pred_check_branch
      %39 = sbr.rel (0) target = $region13
    $region12: #{tpu_custom_call.1} parent=1 // pred_region
      %41 = dma.done [#allocation5], 512
    $region13: #{tpu_custom_call.1} parent=1 // pred_fallthru
      _
    // Predicated region
    $region14: #{tpu_custom_call.1} parent=1 // pred_check
      _
    $region15: #{tpu_custom_call.1} parent=1 // pred_check_branch
      %43 = sbr.rel (0) target = $region17
    $region16: #{tpu_custom_call.1} parent=1 // pred_region
      %45 = dma.done [#allocation8], 512
    $region17: #{tpu_custom_call.1} parent=1 // pred_fallthru
      _
    %v46 = vld [vmem:[#allocation4] sm:$0xff]
    %v47 = vld [vmem:[#allocation4 + $0x8] sm:$0xff]
    %v48 = vld [vmem:[#allocation4 + $0x10] sm:$0xff]
    %v49 = vld [vmem:[#allocation4 + $0x18] sm:$0xff]
    %v50 = vld [vmem:[#allocation7] sm:$0xff]
    %v51 = vld [vmem:[#allocation7 + $0x8] sm:$0xff]
    %v52 = vld [vmem:[#allocation7 + $0x10] sm:$0xff]
    %v53 = vld [vmem:[#allocation7 + $0x18] sm:$0xff]
    %v54 = vmul.f32 %v46, %v50
    %v55 = vmul.f32 %v47, %v51
    %v56 = vmul.f32 %v48, %v52
    %v57 = vmul.f32 %v49, %v53
    %v58 = vmax.f32 %v54, 0.0
    %v59 = vmax.f32 %v55, 0.0
    %v60 = vmax.f32 %v56, 0.0
    %v61 = vmax.f32 %v57, 0.0
    %62 = vst [vmem:[#allocation9] sm:$0xff] %v58
    %63 = vst [vmem:[#allocation9 + $0x8] sm:$0xff] %v59
    %64 = vst [vmem:[#allocation9 + $0x10] sm:$0xff] %v60
    %65 = vst [vmem:[#allocation9 + $0x18] sm:$0xff] %v61
    // Predicated region
    $region18: #{tpu_custom_call.1} parent=1 // pred_check
      _
    $region19: #{tpu_custom_call.1} parent=1 // pred_check_branch
      %67 = sbr.rel (0) target = $region21
    $region20: #{tpu_custom_call.1} parent=1 // pred_region
      %69 = vsyncadd [#allocation6], 0
      %s70 = sshll.u32 [#allocation9], 4
      %s71 = int_to_ptr.vmem [resolvable:$true] %s70
      %s72 = sshll.u32 %s3, 4
      %s73 = int_to_ptr.hbm [resolvable:$true] %s72
      %78 = dma.vmem_to_hbm [thread:$0]  %s71, 512, %s73, [#allocation6], 256, 256, 16
    $region21: #{tpu_custom_call.1} parent=1 // pred_fallthru
      _
    // Predicated region
    $region22: #{tpu_custom_call.1} parent=1 // pred_check
      _
    $region23: #{tpu_custom_call.1} parent=1 // pred_check_branch
      %80 = sbr.rel (0) target = $region25
    $region24: #{tpu_custom_call.1} parent=1 // pred_region
      %82 = dma.done [#allocation6], 512
    $region25: #{tpu_custom_call.1} parent=1 // pred_fallthru
      _
    %83 = vsyncpa [#allocation5], 1
    %84 = vsyncpa [#allocation8], 1
    %85 = vsyncpa [#allocation6], 1

</llo_original>
